<compile_context>
chip_gen: v6e
topology: v6e:2x2x1
jax: 0.10.0
libtpu: 0.0.40
codegen_flags: <defaults>
</compile_context>

<pallas_src>
import jax
import jax.numpy as jnp
from jax.experimental import pallas as pl
from jax.experimental.pallas import tpu as pltpu

_TARGET_BLOCK_ELEMS = 512 * 1024   # ~2 MiB per f32 pipeline buffer
_MIN_LANES = 128


def _super_gaussian_kernel(coeff_ref, x_ref, o_ref):
    # coeff_ref: (1,) f32 in SMEM holding b / (2 * a**2).
    c = coeff_ref[0]
    x = x_ref[...].astype(jnp.float32)
    o_ref[...] = jnp.exp((x * x) * (-c)).astype(o_ref.dtype)


def _choose_lanes(n):
    """Widest lane count in {1024,512,256,128} dividing n; else pad to 128."""
    for lanes in (1024, 512, 256, 128):
        if n % lanes == 0:
            return lanes, 0
    return _MIN_LANES, (-n) % _MIN_LANES


def super_gaussian_activation(x, a, b):
    """y = exp(-x**2 / (2*a**2)) ** b, elementwise, via a Pallas TPU kernel."""
    orig_shape = x.shape
    out_dtype = x.dtype

    a32 = jnp.asarray(a, jnp.float32).reshape(())
    b32 = jnp.asarray(b, jnp.float32).reshape(())
    coeff = (b32 / (2.0 * a32 * a32)).reshape(1)          # (1,) f32 scalar

    xf = x.reshape(-1)
    n = xf.shape[0]
    lanes, pad = _choose_lanes(n)
    if pad:
        xf = jnp.pad(xf, (0, pad))                        # rare ragged tail only
    rows = xf.shape[0] // lanes
    x2d = xf.reshape(rows, lanes)

    block_rows = min(rows, max(8, _TARGET_BLOCK_ELEMS // lanes))
    if block_rows < rows:
        block_rows = (block_rows // 8) * 8                # sublane-aligned tile
    grid = (pl.cdiv(rows, block_rows),)

    out2d = pl.pallas_call(
        _super_gaussian_kernel,
        out_shape=jax.ShapeDtypeStruct((rows, lanes), out_dtype),
        grid=grid,
        in_specs=[
            pl.BlockSpec(memory_space=pltpu.MemorySpace.SMEM),    # scalar coeff
            pl.BlockSpec((block_rows, lanes), lambda i: (i, 0)),
        ],
        out_specs=pl.BlockSpec((block_rows, lanes), lambda i: (i, 0)),
        compiler_params=pltpu.CompilerParams(
            dimension_semantics=("parallel",),
        ),
    )(coeff, x2d)

    out = out2d.reshape(-1)
    if pad:
        out = out[:n]
    return out.reshape(orig_shape)


def super_gaussian_reference(x, a, b):
    a = jnp.asarray(a, x.dtype)
    b = jnp.asarray(b, x.dtype)
    return jnp.exp(-x ** 2 / (2.0 * a ** 2)) ** b


if __name__ == "__main__":
    key = jax.random.PRNGKey(0)
    # Module defaults are a=1.0, b=1.0; use nontrivial values to exercise them.
    a, b = 1.2, 1.5

    # NCHW activation, consistent with use inside a conv/MLP net.
    x = jax.random.normal(key, (2, 4, 16, 16), dtype=jnp.float32)
    y = super_gaussian_activation(x, a, b)
    jax.block_until_ready(y)
    y_ref = super_gaussian_reference(x, a, b)
    assert y.shape == x.shape and y.dtype == x.dtype
    assert jnp.allclose(y, y_ref, atol=1e-5, rtol=1e-5)

    # Ragged flat size -> exercises the pad-to-128 fallback path.
    x2 = jax.random.normal(jax.random.PRNGKey(1), (3, 5, 7), dtype=jnp.float32)
    y2 = super_gaussian_activation(x2, a, b)
    jax.block_until_ready(y2)
    assert jnp.allclose(y2, super_gaussian_reference(x2, a, b), atol=1e-5, rtol=1e-5)

    # Multi-step grid with a partial (masked) last row-block:
    # 786432 elems -> (768, 1024) slab, block_rows=512 -> grid=2 (last block partial).
    x3 = jax.random.normal(jax.random.PRNGKey(2), (1024, 768), dtype=jnp.float32)
    y3 = super_gaussian_activation(x3, a, b)
    jax.block_until_ready(y3)
    assert jnp.allclose(y3, super_gaussian_reference(x3, a, b), atol=1e-5, rtol=1e-5)

    # bf16 path: native dtype through the DMA, f32 math inside the kernel.
    x4 = jax.random.normal(jax.random.PRNGKey(3), (8, 32), dtype=jnp.bfloat16)
    y4 = super_gaussian_activation(x4, a, b)
    jax.block_until_ready(y4)
    assert y4.dtype == jnp.bfloat16
    assert jnp.allclose(y4.astype(jnp.float32),
                        super_gaussian_reference(x4.astype(jnp.float32), a, b),
                        atol=2e-2, rtol=2e-2)

    print("KERNEL_OK")
</pallas_src>

<mosaic_0001>
module attributes {stable_mosaic.version = 11 : i64} {
  func.func @_super_gaussian_kernel(%arg0: i32, %arg1: memref<1xf32, #tpu.memory_space<smem>>, %arg2: memref<2x1024xf32, #tpu.memory_space<vmem>>, %arg3: memref<2x1024xf32, #tpu.memory_space<vmem>>) attributes {dimension_semantics = [#tpu.dimension_semantics<parallel>], iteration_bounds = array<i64: 1>, scalar_prefetch = 0 : i64, scratch_operands = 0 : i64, tpu.core_type = #tpu.core_type<tc>, window_params = [{transform_indices = @transform_0, window_bounds = array<i64: 1>}, {transform_indices = @transform_1, window_bounds = array<i64: 2, 1024>}, {transform_indices = @transform_2, window_bounds = array<i64: 2, 1024>}]} {
    %c0 = arith.constant 0 : index
    %0 = memref.load %arg1[%c0] : memref<1xf32, #tpu.memory_space<smem>>
    %c0_0 = arith.constant 0 : index
    %c0_1 = arith.constant 0 : index
    %1 = vector.load %arg2[%c0_0, %c0_1] : memref<2x1024xf32, #tpu.memory_space<vmem>>, vector<2x1024xf32>
    %2 = arith.mulf %1, %1 : vector<2x1024xf32>
    %cst = arith.constant 0.000000e+00 : f32
    %3 = arith.subf %cst, %0 : f32
    %4 = vector.broadcast %3 : f32 to vector<2x1024xf32>
    %5 = arith.mulf %2, %4 : vector<2x1024xf32>
    %6 = math.exp %5 : vector<2x1024xf32>
    %c0_2 = arith.constant 0 : index
    %c0_3 = arith.constant 0 : index
    %7 = vector.load %arg3[%c0_2, %c0_3] : memref<2x1024xf32, #tpu.memory_space<vmem>>, vector<2x1024xf32>
    tpu.vector_store %arg3[%c0_2, %c0_3], %6 {strides = array<i32>} : memref<2x1024xf32, #tpu.memory_space<vmem>>, vector<2x1024xf32>,
    return
  }
  func.func @transform_0(%arg0: i32) -> i32 {
    %c0_i32 = arith.constant 0 : i32
    %c0_i32_0 = arith.constant 0 : i32
    return %c0_i32 : i32
  }
  func.func @transform_1(%arg0: i32) -> (i32, i32) {
    %c0_i32 = arith.constant 0 : i32
    %c0_i32_0 = arith.constant 0 : i32
    return %arg0, %c0_i32 : i32, i32
  }
  func.func @transform_2(%arg0: i32) -> (i32, i32) {
    %c0_i32 = arith.constant 0 : i32
    %c0_i32_0 = arith.constant 0 : i32
    return %arg0, %c0_i32 : i32, i32
  }
}

</mosaic_0001>

<llo_original>
// kernel: tpu_custom_call.1
$region0: #{tpu_custom_call.1}
  #allocation0 [shape = 'u32[]', space=smem, size = 0x4, offset = 0x4, fixed_abs, tag = 'smem constant byte address 0x4 - core index']
  #allocation1 [shape = 'u32[144,128]{1,0:T(1,128)}', space=vmem, size = 0x12000, scoped, tag = 'internal scratch']
  #allocation2 [shape = 'f32[1]{0:T(128)S(6)}', space=smem, size = 0x200, scoped, tag = 'scoped memory for tpu_custom_call.1']
  %s0 = inlined_call_operand.<no memory space> [shape: f32[1], index: 0, kind: input, shape index: {}]
  %s1 = inlined_call_operand.hbm [shape: f32[2,1024], index: 1, kind: input, shape index: {}]
  %s2 = inlined_call_operand.hbm [shape: f32[2,1024], index: 2, kind: output, shape index: {}]
  %s3 = sld [smem:[#allocation0]]
  $region22: #{tpu_custom_call.1} parent=0
    _
  %s5 = ssub.s32 1, %s3
  %s6 = scalar_select 0, %s5, %s3
  %7 = sst [smem:[#allocation2]] %s0
  $region1: #{tpu_custom_call.1} parent=0
    #allocation3 [shape = 'u8[8192]{0}', space=vmem, size = 0x2000, scoped, tag = 'input window, operand 1, single buffered']
    #allocation4 [shape = 's32[1]{0}', space=sflag, size = 0x4, scoped, tag = 'scoped memory for tpu_custom_call.1']
    #allocation5 [shape = 's32[1]{0}', space=sflag, size = 0x4, scoped, tag = 'scoped memory for tpu_custom_call.1']
    #allocation6 [shape = 'u8[8192]{0}', space=vmem, size = 0x2000, scoped, tag = 'output window, operand 0, single buffered']
    %8 = vsyncpa [#allocation4], 0
    %9 = vsyncpa [#allocation5], 0
    // Predicated region
    $region2: #{tpu_custom_call.1} parent=1 // pred_check
      _
    $region3: #{tpu_custom_call.1} parent=1 // pred_check_branch
      %11 = sbr.rel (0) target = $region5
    $region4: #{tpu_custom_call.1} parent=1 // pred_region
      _
    $region5: #{tpu_custom_call.1} parent=1 // pred_fallthru
      _
    // Predicated region
    $region6: #{tpu_custom_call.1} parent=1 // pred_check
      _
    $region7: #{tpu_custom_call.1} parent=1 // pred_check_branch
      %13 = sbr.rel (0) target = $region9
    $region8: #{tpu_custom_call.1} parent=1 // pred_region
      %s15 = ssub.s32 256, 256
      %16 = vsyncadd [#allocation4], %s15
      %s18 = sshll.u32 [#allocation3], 4
      %s19 = int_to_ptr.vmem [resolvable:$true] %s18
      %21 = dma.hbm_to_vmem [thread:$0]  %s1, 256, %s19, [#allocation4]
    $region9: #{tpu_custom_call.1} parent=1 // pred_fallthru
      _
    // Predicated region
    $region10: #{tpu_custom_call.1} parent=1 // pred_check
      _
    $region11: #{tpu_custom_call.1} parent=1 // pred_check_branch
      %23 = sbr.rel (0) target = $region13
    $region12: #{tpu_custom_call.1} parent=1 // pred_region
      %24 = dma.done [#allocation4], 256
    $region13: #{tpu_custom_call.1} parent=1 // pred_fallthru
      _
    %s25 = sld [smem:[#allocation2]]
    %v26 = vld [vmem:[#allocation3] sm:$0xff]
    %v27 = vld [vmem:[#allocation3 + $0x8] sm:$0xff]
    %v28 = vmul.f32 %v26, %v26
    %v29 = vmul.f32 %v27, %v27
    %s30 = ssub.f32 0.0, %s25
    %v31 = vstv %s30
    %v32 = vmul.f32 %v28, %v31
    %v33 = vmul.f32 %v29, %v31
    %v34 = vmul.f32 %v32, 1.442695
    %v35 = vpow.pop %v34
    %v36 = vmul.f32 %v33, 1.442695
    %v37 = vpow.pop %v36
    %38 = vst [vmem:[#allocation6] sm:$0xff] %v35
    %39 = vst [vmem:[#allocation6 + $0x8] sm:$0xff] %v37
    // Predicated region
    $region14: #{tpu_custom_call.1} parent=1 // pred_check
      _
    $region15: #{tpu_custom_call.1} parent=1 // pred_check_branch
      %41 = sbr.rel (0) target = $region17
    $region16: #{tpu_custom_call.1} parent=1 // pred_region
      %s43 = ssub.s32 256, 256
      %44 = vsyncadd [#allocation5], %s43
      %s46 = sshll.u32 [#allocation6], 4
      %s47 = int_to_ptr.vmem [resolvable:$true] %s46
      %49 = dma.vmem_to_hbm [thread:$0]  %s47, 256, %s2, [#allocation5]
    $region17: #{tpu_custom_call.1} parent=1 // pred_fallthru
      _
    // Predicated region
    $region18: #{tpu_custom_call.1} parent=1 // pred_check
      _
    $region19: #{tpu_custom_call.1} parent=1 // pred_check_branch
      %51 = sbr.rel (0) target = $region21
    $region20: #{tpu_custom_call.1} parent=1 // pred_region
      %52 = dma.done [#allocation5], 256
    $region21: #{tpu_custom_call.1} parent=1 // pred_fallthru
      _
    %53 = vsyncpa [#allocation4], 1
    %54 = vsyncpa [#allocation5], 1

</llo_original>
